<compile_context>
chip_gen: v7x
topology: tpu7x:2x2x1
jax: 0.10.0
libtpu: 0.0.40
codegen_flags: <defaults>
</compile_context>

<pallas_src>
import functools

import jax
import jax.numpy as jnp
from jax.experimental import pallas as pl
from jax.experimental.pallas import tpu as pltpu


# --------------------------------------------------------------------------- #
# Kernels
# --------------------------------------------------------------------------- #
def _ffn_resident_kernel(x_ref, w1_ref, b1_ref, w2_ref, b2_ref, o_ref):
    # x_ref: (tm, C) bf16 rows; w1/w2 fully resident bf16; biases f32.
    h = jnp.dot(x_ref[...], w1_ref[...], preferred_element_type=jnp.float32)
    h = jnp.maximum(h + b1_ref[...], 0.0)                     # ReLU on the VPU
    out = jnp.dot(h.astype(jnp.bfloat16), w2_ref[...],
                  preferred_element_type=jnp.float32) + b2_ref[...]
    o_ref[...] = out.astype(o_ref.dtype)                      # dropout == identity (eval)


def _ffn_stream_kernel_accout(x_ref, w1_ref, b1_ref, w2_ref, b2_ref, o_ref):
    # Streamed H chunks; output dtype is f32, so partial sums accumulate
    # directly into the (VMEM-resident across j) output block -- no scratch.
    j = pl.program_id(1)
    h = jnp.dot(x_ref[...], w1_ref[...], preferred_element_type=jnp.float32)
    h = jnp.maximum(h + b1_ref[...], 0.0)
    part = jnp.dot(h.astype(jnp.bfloat16), w2_ref[...],
                   preferred_element_type=jnp.float32)

    @pl.when(j == 0)
    def _():
        o_ref[...] = part + b2_ref[...]

    @pl.when(j != 0)
    def _():
        o_ref[...] += part


def _ffn_stream_kernel_scratch(x_ref, w1_ref, b1_ref, w2_ref, b2_ref, o_ref,
                               acc_ref):
    # Streamed H chunks; non-f32 output, accumulate in a f32 VMEM scratch.
    j = pl.program_id(1)

    @pl.when(j == 0)
    def _():
        acc_ref[...] = jnp.zeros_like(acc_ref)

    h = jnp.dot(x_ref[...], w1_ref[...], preferred_element_type=jnp.float32)
    h = jnp.maximum(h + b1_ref[...], 0.0)
    acc_ref[...] += jnp.dot(h.astype(jnp.bfloat16), w2_ref[...],
                            preferred_element_type=jnp.float32)

    @pl.when(j == pl.num_programs(1) - 1)
    def _():
        o_ref[...] = (acc_ref[...] + b2_ref[...]).astype(o_ref.dtype)


# --------------------------------------------------------------------------- #
# Tiling helpers (sized against the actual chip's VMEM)
# --------------------------------------------------------------------------- #
_TM_CANDIDATES = (1024, 768, 512, 384, 256, 128)   # descending; multiples of 8


def _pick_hidden_tile(H, target):
    """Largest multiple of 128 that divides H and is <= target (else full H)."""
    if H <= target:
        return H
    t = (target // 128) * 128
    while t >= 128:
        if H % t == 0:
            return t
        t -= 128
    return H


def _vmem_capacity_bytes():
    try:
        return int(pltpu.get_tpu_info().vmem_capacity_bytes)
    except Exception:
        return 64 << 20    # conservative fallback (v7x per-TensorCore)


def _resident_bytes(tm, C, H, out_itemsize):
    """VMEM need for the resident-weights path (double-buffered x/out tiles)."""
    return (2 * tm * C * 2                  # x tiles (bf16)
            + 2 * tm * C * out_itemsize     # out tiles
            + 2 * 2 * C * H * 2             # W1 + W2 (bf16), 2 buffers each
            + 2 * 8 * (H + C) * 4           # sublane-padded biases
            + tm * H * 6)                   # f32 h intermediate + its bf16 copy


def _stream_bytes(tm, th, C, out_itemsize, use_scratch):
    """VMEM need for the streamed-H path."""
    return (2 * tm * C * 2                  # x tiles (bf16)
            + 2 * tm * C * out_itemsize     # out tiles
            + 2 * 2 * C * th * 2            # W1 + W2 chunks (bf16)
            + 2 * 8 * (th + C) * 4          # sublane-padded bias chunks
            + (tm * C * 4 if use_scratch else 0)
            + tm * th * 6)                  # f32 h intermediate + bf16 copy


# --------------------------------------------------------------------------- #
# Wrapper
# --------------------------------------------------------------------------- #
@functools.partial(jax.jit,
                   static_argnames=("block_m", "block_h", "weights_resident"))
def feed_forward(x, w1, b1, w2, b2, *, block_m=1024, block_h=1024,
                 weights_resident=None):
    """x: (..., C). w1: (C, 4C), b1: (1, 4C), w2: (4C, C), b2: (1, C)."""
    orig_shape = x.shape
    C = orig_shape[-1]
    # bf16 once in the wrapper: halves x HBM traffic / VMEM, removes per-step cast.
    x2d = x.reshape(-1, C).astype(jnp.bfloat16)
    M = x2d.shape[0]
    H = w1.shape[1]                         # 4 * C
    out_dtype = x.dtype
    out_itemsize = jnp.dtype(out_dtype).itemsize

    w1_b = w1.astype(jnp.bfloat16)
    w2_b = w2.astype(jnp.bfloat16)
    b1_f = b1.astype(jnp.float32)
    b2_f = b2.astype(jnp.float32)

    vmem_cap = _vmem_capacity_bytes()       # 128 MiB on v5e/v6e, 64 MiB/TC on v7x
    budget = (vmem_cap * 4) // 5            # ~20% headroom for compiler scratch
    vmem_limit = (vmem_cap * 17) // 20      # scoped limit ~85% of capacity

    def pick_tm(fit_fn):
        tm = min(128, M)
        for cand in _TM_CANDIDATES:
            if cand > block_m:
                continue
            t = min(cand, M)
            if fit_fn(t) <= budget:
                tm = t
                break
        # Keep >=2 row steps so the "parallel" axis shards across both v7x
        # TensorCores (cheap / harmless on single-TC chips).
        if tm >= M and M >= 512:
            tm = max(256, (M // 2) // 8 * 8)
        return tm

    use_resident = weights_resident
    if use_resident is None:
        use_resident = _resident_bytes(min(128, M), C, H, out_itemsize) <= budget

    if use_resident:
        # ---- Resident-weights path: 1-D grid over rows, weights DMA'd once. ----
        tm = pick_tm(lambda t: _resident_bytes(t, C, H, out_itemsize))
        out2d = pl.pallas_call(
            _ffn_resident_kernel,
            out_shape=jax.ShapeDtypeStruct((M, C), out_dtype),
            grid_spec=pltpu.PrefetchScalarGridSpec(
                num_scalar_prefetch=0,
                grid=(pl.cdiv(M, tm),),
                in_specs=[
                    pl.BlockSpec((tm, C), lambda i: (i, 0)),   # x rows
                    pl.BlockSpec((C, H), lambda i: (0, 0)),    # W1 (resident)
                    pl.BlockSpec((1, H), lambda i: (0, 0)),    # b1 (resident)
                    pl.BlockSpec((H, C), lambda i: (0, 0)),    # W2 (resident)
                    pl.BlockSpec((1, C), lambda i: (0, 0)),    # b2 (resident)
                ],
                out_specs=pl.BlockSpec((tm, C), lambda i: (i, 0)),
            ),
            compiler_params=pltpu.CompilerParams(
                dimension_semantics=("parallel",),
                vmem_limit_bytes=vmem_limit,
            ),
        )(x2d, w1_b, b1_f, w2_b, b2_f)
    else:
        # ---- Streamed-H path: 2-D grid, weights stream in th-wide chunks. ----
        acc_in_out = jnp.dtype(out_dtype) == jnp.float32
        th = _pick_hidden_tile(H, block_h)
        while th > 128 and _stream_bytes(min(128, M), th, C, out_itemsize,
                                         not acc_in_out) > budget:
            new_th = _pick_hidden_tile(H, th - 128)
            if new_th >= th:
                break
            th = new_th
        tm = pick_tm(lambda t: _stream_bytes(t, th, C, out_itemsize,
                                             not acc_in_out))
        kernel = (_ffn_stream_kernel_accout if acc_in_out
                  else _ffn_stream_kernel_scratch)
        scratch = [] if acc_in_out else [pltpu.VMEM((tm, C), jnp.float32)]
        out2d = pl.pallas_call(
            kernel,
            out_shape=jax.ShapeDtypeStruct((M, C), out_dtype),
            grid_spec=pltpu.PrefetchScalarGridSpec(
                num_scalar_prefetch=0,
                grid=(pl.cdiv(M, tm), H // th),
                in_specs=[
                    pl.BlockSpec((tm, C), lambda i, j: (i, 0)),   # x rows
                    pl.BlockSpec((C, th), lambda i, j: (0, j)),   # W1 chunk
                    pl.BlockSpec((1, th), lambda i, j: (0, j)),   # b1 chunk
                    pl.BlockSpec((th, C), lambda i, j: (j, 0)),   # W2 chunk
                    pl.BlockSpec((1, C), lambda i, j: (0, 0)),    # b2
                ],
                out_specs=pl.BlockSpec((tm, C), lambda i, j: (i, 0)),
                scratch_shapes=scratch,
            ),
            compiler_params=pltpu.CompilerParams(
                dimension_semantics=("parallel", "arbitrary"),
                vmem_limit_bytes=vmem_limit,
            ),
        )(x2d, w1_b, b1_f, w2_b, b2_f)

    return out2d.reshape(orig_shape)


def init_params(key, size, dtype=jnp.float32):
    """Deterministic init matching nn.Linear's U(-1/sqrt(fan_in), 1/sqrt(fan_in))."""
    k1, k2, k3, k4 = jax.random.split(key, 4)
    hid = 4 * size
    bound1 = 1.0 / (size ** 0.5)
    bound2 = 1.0 / (hid ** 0.5)
    w1 = jax.random.uniform(k1, (size, hid), dtype, -bound1, bound1)   # (in, out)
    b1 = jax.random.uniform(k2, (1, hid), dtype, -bound1, bound1)
    w2 = jax.random.uniform(k3, (hid, size), dtype, -bound2, bound2)   # (in, out)
    b2 = jax.random.uniform(k4, (1, size), dtype, -bound2, bound2)
    return w1, b1, w2, b2


if __name__ == "__main__":
    # Small shapes: batch=2, seq=8, hidden size=32 (FFN inner dim = 128).
    # NOTE: for real model widths, C should be a multiple of 128 for lane-dense
    # stores and full MXU utilization; tiny C=32 is demo-only.
    B, T, SIZE = 2, 8, 32
    key = jax.random.PRNGKey(0)
    kx, kp = jax.random.split(key)

    x = jax.random.normal(kx, (B, T, SIZE), jnp.float32)
    w1, b1, w2, b2 = init_params(kp, SIZE)

    # Pure-JAX reference (bf16 matmuls, f32 accumulation, eval-mode dropout).
    xb = x.reshape(-1, SIZE).astype(jnp.bfloat16)
    h_ref = jnp.maximum(
        jnp.dot(xb, w1.astype(jnp.bfloat16), preferred_element_type=jnp.float32)
        + b1, 0.0)
    ref_f32 = (jnp.dot(h_ref.astype(jnp.bfloat16), w2.astype(jnp.bfloat16),
                       preferred_element_type=jnp.float32) + b2
               ).reshape(B, T, SIZE)

    # 1) Default path (weights VMEM-resident at this size), f32 output.
    out = jax.block_until_ready(feed_forward(x, w1, b1, w2, b2))
    assert out.shape == (B, T, SIZE)
    assert jnp.allclose(out, ref_f32.astype(out.dtype), atol=2e-2, rtol=2e-2)

    # 2) Streamed-H path, f32 output (accumulates directly into o_ref).
    out_s = jax.block_until_ready(
        feed_forward(x, w1, b1, w2, b2, weights_resident=False))
    assert jnp.allclose(out_s, ref_f32.astype(out_s.dtype), atol=2e-2, rtol=2e-2)

    # 3) Streamed-H path, bf16 output (f32 scratch accumulator variant).
    out_b = jax.block_until_ready(
        feed_forward(x.astype(jnp.bfloat16), w1, b1, w2, b2,
                     weights_resident=False))
    assert out_b.dtype == jnp.bfloat16
    assert jnp.allclose(out_b.astype(jnp.float32), ref_f32,
                        atol=5e-2, rtol=5e-2)

    print("KERNEL_OK")
</pallas_src>

<mosaic_0001>
module attributes {stable_mosaic.version = 11 : i64} {
  func.func @_ffn_resident_kernel(%arg0: i32, %arg1: memref<16x32xbf16, #tpu.memory_space<vmem>>, %arg2: memref<32x128xbf16, #tpu.memory_space<vmem>>, %arg3: memref<1x128xf32, #tpu.memory_space<vmem>>, %arg4: memref<128x32xbf16, #tpu.memory_space<vmem>>, %arg5: memref<1x32xf32, #tpu.memory_space<vmem>>, %arg6: memref<16x32xf32, #tpu.memory_space<vmem>>) attributes {dimension_semantics = [#tpu.dimension_semantics<parallel>], iteration_bounds = array<i64: 1>, scalar_prefetch = 0 : i64, scratch_operands = 0 : i64, tpu.core_type = #tpu.core_type<tc>, window_params = [{transform_indices = @transform_0, window_bounds = array<i64: 16, 32>}, {pipeline_mode = #tpu.pipeline_mode<synchronous>, transform_indices = @transform_1, window_bounds = array<i64: 32, 128>}, {pipeline_mode = #tpu.pipeline_mode<synchronous>, transform_indices = @transform_2, window_bounds = array<i64: 1, 128>}, {pipeline_mode = #tpu.pipeline_mode<synchronous>, transform_indices = @transform_3, window_bounds = array<i64: 128, 32>}, {pipeline_mode = #tpu.pipeline_mode<synchronous>, transform_indices = @transform_4, window_bounds = array<i64: 1, 32>}, {transform_indices = @transform_5, window_bounds = array<i64: 16, 32>}]} {
    %c0 = arith.constant 0 : index
    %c0_0 = arith.constant 0 : index
    %0 = vector.load %arg1[%c0, %c0_0] : memref<16x32xbf16, #tpu.memory_space<vmem>>, vector<16x32xbf16>
    %c0_1 = arith.constant 0 : index
    %c0_2 = arith.constant 0 : index
    %1 = vector.load %arg2[%c0_1, %c0_2] : memref<32x128xbf16, #tpu.memory_space<vmem>>, vector<32x128xbf16>
    %cst = arith.constant dense<0.000000e+00> : vector<16x128xf32>
    %2 = tpu.matmul %0, %1, %cst {dimension_numbers = #tpu.dot_dimension_numbers<[1], [0], [0], [1], [0, 0, 1, 1], [], []>} : vector<16x32xbf16>, vector<32x128xbf16>, vector<16x128xf32> -> vector<16x128xf32>
    %c0_3 = arith.constant 0 : index
    %c0_4 = arith.constant 0 : index
    %3 = vector.load %arg3[%c0_3, %c0_4] : memref<1x128xf32, #tpu.memory_space<vmem>>, vector<1x128xf32>
    %4 = vector.broadcast %3 : vector<1x128xf32> to vector<16x128xf32>
    %5 = arith.addf %2, %4 : vector<16x128xf32>
    %cst_5 = arith.constant 0.000000e+00 : f32
    %6 = vector.broadcast %cst_5 : f32 to vector<16x128xf32>
    %7 = arith.maximumf %5, %6 : vector<16x128xf32>
    %8 = arith.truncf %7 : vector<16x128xf32> to vector<16x128xbf16>
    %c0_6 = arith.constant 0 : index
    %c0_7 = arith.constant 0 : index
    %9 = vector.load %arg4[%c0_6, %c0_7] : memref<128x32xbf16, #tpu.memory_space<vmem>>, vector<128x32xbf16>
    %cst_8 = arith.constant dense<0.000000e+00> : vector<16x32xf32>
    %10 = tpu.matmul %8, %9, %cst_8 {dimension_numbers = #tpu.dot_dimension_numbers<[1], [0], [0], [1], [0, 0, 1, 1], [], []>} : vector<16x128xbf16>, vector<128x32xbf16>, vector<16x32xf32> -> vector<16x32xf32>
    %c0_9 = arith.constant 0 : index
    %c0_10 = arith.constant 0 : index
    %11 = vector.load %arg5[%c0_9, %c0_10] : memref<1x32xf32, #tpu.memory_space<vmem>>, vector<1x32xf32>
    %12 = vector.broadcast %11 : vector<1x32xf32> to vector<16x32xf32>
    %13 = arith.addf %10, %12 : vector<16x32xf32>
    %c0_11 = arith.constant 0 : index
    %c0_12 = arith.constant 0 : index
    %14 = vector.load %arg6[%c0_11, %c0_12] : memref<16x32xf32, #tpu.memory_space<vmem>>, vector<16x32xf32>
    tpu.vector_store %arg6[%c0_11, %c0_12], %13 {strides = array<i32>} : memref<16x32xf32, #tpu.memory_space<vmem>>, vector<16x32xf32>,
    return
  }
  func.func @transform_0(%arg0: i32) -> (i32, i32) {
    %c0_i32 = arith.constant 0 : i32
    %c0_i32_0 = arith.constant 0 : i32
    return %arg0, %c0_i32 : i32, i32
  }
  func.func @transform_1(%arg0: i32) -> (i32, i32) {
    %c0_i32 = arith.constant 0 : i32
    %c0_i32_0 = arith.constant 0 : i32
    %c0_i32_1 = arith.constant 0 : i32
    return %c0_i32, %c0_i32_0 : i32, i32
  }
  func.func @transform_2(%arg0: i32) -> (i32, i32) {
    %c0_i32 = arith.constant 0 : i32
    %c0_i32_0 = arith.constant 0 : i32
    %c0_i32_1 = arith.constant 0 : i32
    return %c0_i32, %c0_i32_0 : i32, i32
  }
  func.func @transform_3(%arg0: i32) -> (i32, i32) {
    %c0_i32 = arith.constant 0 : i32
    %c0_i32_0 = arith.constant 0 : i32
    %c0_i32_1 = arith.constant 0 : i32
    return %c0_i32, %c0_i32_0 : i32, i32
  }
  func.func @transform_4(%arg0: i32) -> (i32, i32) {
    %c0_i32 = arith.constant 0 : i32
    %c0_i32_0 = arith.constant 0 : i32
    %c0_i32_1 = arith.constant 0 : i32
    return %c0_i32, %c0_i32_0 : i32, i32
  }
  func.func @transform_5(%arg0: i32) -> (i32, i32) {
    %c0_i32 = arith.constant 0 : i32
    %c0_i32_0 = arith.constant 0 : i32
    return %arg0, %c0_i32 : i32, i32
  }
}

</mosaic_0001>

<llo_original>
// kernel: feed_forward.1
$region0: #{feed_forward.1}
  #allocation0 [shape = 'u32[]', space=smem, size = 0x4, offset = 0x4, fixed_abs, tag = 'smem constant byte address 0x4 - core index']
  #allocation1 [shape = 'u32[144,128]{1,0:T(1,128)}', space=vmem, size = 0x12000, scoped, tag = 'internal scratch']
  %s0 = inlined_call_operand.vmem [shape: bf16[16,32], index: 0, kind: input, shape index: {}]
  %s1 = inlined_call_operand.vmem [shape: bf16[32,128], index: 1, kind: input, shape index: {}]
  %s2 = inlined_call_operand.vmem [shape: f32[1,128], index: 2, kind: input, shape index: {}]
  %s3 = inlined_call_operand.vmem [shape: bf16[128,32], index: 3, kind: input, shape index: {}]
  %s4 = inlined_call_operand.vmem [shape: f32[1,32], index: 4, kind: input, shape index: {}]
  %s5 = inlined_call_operand.hbm [shape: f32[16,32], index: 5, kind: output, shape index: {}]
  %s6 = sld [smem:[#allocation0]]
  $region30: #{feed_forward.1} parent=0
    _
  %s8 = ssub.s32 1, %s6
  %s9 = scalar_select 0, %s8, %s6
  $region1: #{feed_forward.1} parent=0
    #allocation2 [shape = 'u8[8192]{0}', space=vmem, size = 0x2000, scoped, tag = 'output window, operand 0, single buffered']
    #allocation3 [shape = 's32[1]{0}', space=sflag, size = 0x4, scoped, tag = 'scoped memory for feed_forward.1']
    %10 = vsyncpa [#allocation3], 0
    // Predicated region
    $region2: #{feed_forward.1} parent=1 // pred_check
      _
    $region3: #{feed_forward.1} parent=1 // pred_check_branch
      %12 = sbr.rel (0) target = $region5
    $region4: #{feed_forward.1} parent=1 // pred_region
      _
    $region5: #{feed_forward.1} parent=1 // pred_fallthru
      _
    // Predicated region
    $region6: #{feed_forward.1} parent=1 // pred_check
      _
    $region7: #{feed_forward.1} parent=1 // pred_check_branch
      %14 = sbr.rel (0) target = $region9
    $region8: #{feed_forward.1} parent=1 // pred_region
      _
    $region9: #{feed_forward.1} parent=1 // pred_fallthru
      _
    // Predicated region
    $region10: #{feed_forward.1} parent=1 // pred_check
      _
    $region11: #{feed_forward.1} parent=1 // pred_check_branch
      %16 = sbr.rel (0) target = $region13
    $region12: #{feed_forward.1} parent=1 // pred_region
      _
    $region13: #{feed_forward.1} parent=1 // pred_fallthru
      _
    // Predicated region
    $region14: #{feed_forward.1} parent=1 // pred_check
      _
    $region15: #{feed_forward.1} parent=1 // pred_check_branch
      %18 = sbr.rel (0) target = $region17
    $region16: #{feed_forward.1} parent=1 // pred_region
      _
    $region17: #{feed_forward.1} parent=1 // pred_fallthru
      _
    // Predicated region
    $region18: #{feed_forward.1} parent=1 // pred_check
      _
    $region19: #{feed_forward.1} parent=1 // pred_check_branch
      %20 = sbr.rel (0) target = $region21
    $region20: #{feed_forward.1} parent=1 // pred_region
      _
    $region21: #{feed_forward.1} parent=1 // pred_fallthru
      _
    %v22 = vld [vmem:[%s0] sm:$0xf]
    %v23 = vld [vmem:[%s0 + $0x4] sm:$0xf]
    %v24 = vld [vmem:[%s1] sm:$0xf]
    %v25 = vld [vmem:[%s1 + $0x4] sm:$0xf]
    %v26 = vld [vmem:[%s1 + $0x8] sm:$0xf]
    %v27 = vld [vmem:[%s1 + $0xc] sm:$0xf]
    %v28 = vld [vmem:[%s2] sm:$0x1]
    %v30 = vlaneseq
    %v31 = vshrl.u32 %v30, 7
    %v32 = vsub.s32 0, %v31
    %v33 = vrot.slane %v28, %v32
    %v37 = vunpack.c.l.b16 %v22
    %v38 = vunpack.c.l.b16 %v23
    %v39 = vpack.c.b16 %v38, %v37
    %v44 = vunpack.c.l.b16 %v24
    %v45 = vunpack.c.l.b16 %v25
    %v46 = vunpack.c.l.b16 %v26
    %v47 = vunpack.c.l.b16 %v27
    %v48 = vpack.c.b16 %v45, %v44
    %v49 = vpack.c.b16 %v47, %v46
    %vm52 = vcmask 261120
    %v54 = vsel %vm52, %v39, 0
    %56 = vmatprep.subr.bf16.mxu0 0
    %57 = vmatpush1.bf16.msra.mxu0 %v48
    %58 = vmatprep.subr.bf16.mxu0 0
    %59 = vmatpush1.bf16.msra.mxu0 %v49
    %60 = vmatprep.subr.bf16.mxu0 0
    %61 = vmatpush1.bf16.msra.mxu0 0
    %62 = vmatprep.subr.bf16.mxu0 0
    %63 = vmatpush1.bf16.msra.mxu0 0
    %64 = vmatprep.subr.bf16.mxu0 0
    %65 = vmatpush1.bf16.msra.mxu0 0
    %66 = vmatprep.subr.bf16.mxu0 0
    %67 = vmatpush1.bf16.msra.mxu0 0
    %68 = vmatprep.subr.bf16.mxu0 0
    %69 = vmatpush1.bf16.msra.mxu0 0
    %70 = vmatprep.subr.bf16.mxu0 0
    %71 = vmatpush1.bf16.msra.mxu0 0
    %72 = vmatprep.subr.bf16.mxu0 0
    %73 = vmatpush1.bf16.msra.mxu0 0
    %74 = vmatprep.subr.bf16.mxu0 0
    %75 = vmatpush1.bf16.msra.mxu0 0
    %76 = vmatprep.subr.bf16.mxu0 0
    %77 = vmatpush1.bf16.msra.mxu0 0
    %78 = vmatprep.subr.bf16.mxu0 0
    %79 = vmatpush1.bf16.msra.mxu0 0
    %80 = vmatprep.subr.bf16.mxu0 0
    %81 = vmatpush1.bf16.msra.mxu0 0
    %82 = vmatprep.subr.bf16.mxu0 0
    %83 = vmatpush1.bf16.msra.mxu0 0
    %84 = vmatprep.subr.bf16.mxu0 0
    %85 = vmatpush1.bf16.msra.mxu0 0
    %86 = vmatprep.subr.bf16.mxu0 0
    %87 = vmatpush1.bf16.msra.mxu0 0
    %88 = vmatprep.mubr.bf16.mxu0 0
    %89 = vmatmul.mubr.bf16.gmra.mrb[0].mxu0 %v54
    %v90 = vpop.f32.mrb[0].mxu0
    %v91 = vadd.f32 %v33, %v90
    %v92 = vpop.f32.mrb[0].mxu0
    %v93 = vpop.f32.mrb[0].mxu0
    %v94 = vadd.f32 %v33, %v93
    %v95 = vpop.f32.mrb[0].mxu0
    %96 = vdwg.mxu0
    %v97 = vmax.f32 %v91, 0.0
    %v98 = vmax.f32 %v94, 0.0
    %v99 = vpack.c.bf16 %v98, %v97
    %v100 = vld [vmem:[%s3] sm:$0xf]
    %v101 = vld [vmem:[%s3 + $0x4] sm:$0xf]
    %v102 = vld [vmem:[%s3 + $0x8] sm:$0xf]
    %v103 = vld [vmem:[%s3 + $0xc] sm:$0xf]
    %v104 = vld [vmem:[%s3 + $0x10] sm:$0xf]
    %v105 = vld [vmem:[%s3 + $0x14] sm:$0xf]
    %v106 = vld [vmem:[%s3 + $0x18] sm:$0xf]
    %v107 = vld [vmem:[%s3 + $0x1c] sm:$0xf]
    %v108 = vld [vmem:[%s3 + $0x20] sm:$0xf]
    %v109 = vld [vmem:[%s3 + $0x24] sm:$0xf]
    %v110 = vld [vmem:[%s3 + $0x28] sm:$0xf]
    %v111 = vld [vmem:[%s3 + $0x2c] sm:$0xf]
    %v112 = vld [vmem:[%s3 + $0x30] sm:$0xf]
    %v113 = vld [vmem:[%s3 + $0x34] sm:$0xf]
    %v114 = vld [vmem:[%s3 + $0x38] sm:$0xf]
    %v115 = vld [vmem:[%s3 + $0x3c] sm:$0xf]
    %v116 = vld [vmem:[%s4] sm:$0x1]
    %v118 = vlaneseq
    %v119 = vshrl.u32 %v118, 7
    %v120 = vsub.s32 0, %v119
    %v121 = vrot.slane %v116, %v120
    %v139 = vunpack.c.l.b16 %v100
    %v140 = vunpack.c.l.b16 %v101
    %v141 = vunpack.c.l.b16 %v102
    %v142 = vunpack.c.l.b16 %v103
    %v143 = vunpack.c.l.b16 %v104
    %v144 = vunpack.c.l.b16 %v105
    %v145 = vunpack.c.l.b16 %v106
    %v146 = vunpack.c.l.b16 %v107
    %v147 = vunpack.c.l.b16 %v108
    %v148 = vunpack.c.l.b16 %v109
    %v149 = vunpack.c.l.b16 %v110
    %v150 = vunpack.c.l.b16 %v111
    %v151 = vunpack.c.l.b16 %v112
    %v152 = vunpack.c.l.b16 %v113
    %v153 = vunpack.c.l.b16 %v114
    %v154 = vunpack.c.l.b16 %v115
    %v155 = vpack.c.b16 %v140, %v139
    %v156 = vpack.c.b16 %v142, %v141
    %v157 = vpack.c.b16 %v144, %v143
    %v158 = vpack.c.b16 %v146, %v145
    %v159 = vpack.c.b16 %v148, %v147
    %v160 = vpack.c.b16 %v150, %v149
    %v161 = vpack.c.b16 %v152, %v151
    %v162 = vpack.c.b16 %v154, %v153
    %171 = vmatprep.subr.bf16.mxu0 0
    %172 = vmatpush1.bf16.msra.mxu0 %v155
    %173 = vmatprep.subr.bf16.mxu0 0
    %174 = vmatpush1.bf16.msra.mxu0 %v156
    %175 = vmatprep.subr.bf16.mxu0 0
    %176 = vmatpush1.bf16.msra.mxu0 %v157
    %177 = vmatprep.subr.bf16.mxu0 0
    %178 = vmatpush1.bf16.msra.mxu0 %v158
    %179 = vmatprep.subr.bf16.mxu0 0
    %180 = vmatpush1.bf16.msra.mxu0 %v159
    %181 = vmatprep.subr.bf16.mxu0 0
    %182 = vmatpush1.bf16.msra.mxu0 %v160
    %183 = vmatprep.subr.bf16.mxu0 0
    %184 = vmatpush1.bf16.msra.mxu0 %v161
    %185 = vmatprep.subr.bf16.mxu0 0
    %186 = vmatpush1.bf16.msra.mxu0 %v162
    %187 = vmatprep.subr.bf16.mxu0 0
    %188 = vmatpush1.bf16.msra.mxu0 0
    %189 = vmatprep.subr.bf16.mxu0 0
    %190 = vmatpush1.bf16.msra.mxu0 0
    %191 = vmatprep.subr.bf16.mxu0 0
    %192 = vmatpush1.bf16.msra.mxu0 0
    %193 = vmatprep.subr.bf16.mxu0 0
    %194 = vmatpush1.bf16.msra.mxu0 0
    %195 = vmatprep.subr.bf16.mxu0 0
    %196 = vmatpush1.bf16.msra.mxu0 0
    %197 = vmatprep.subr.bf16.mxu0 0
    %198 = vmatpush1.bf16.msra.mxu0 0
    %199 = vmatprep.subr.bf16.mxu0 0
    %200 = vmatpush1.bf16.msra.mxu0 0
    %201 = vmatprep.subr.bf16.mxu0 0
    %202 = vmatpush1.bf16.msra.mxu0 0
    %203 = vmatprep.mubr.bf16.mxu0 0
    %204 = vmatmul.mubr.bf16.gmra.mrb[0].mxu0 %v99
    %v205 = vpop.f32.mrb[0].mxu0
    %v206 = vadd.f32 %v121, %v205
    %v207 = vpop.f32.mrb[0].mxu0
    %v208 = vpop.f32.mrb[0].mxu0
    %v209 = vadd.f32 %v121, %v208
    %v210 = vpop.f32.mrb[0].mxu0
    %211 = vdwg.mxu0
    %212 = vst.msk [vmem:[#allocation2] sm:$0xff] %vm52, %v206
    %213 = vst.msk [vmem:[#allocation2 + $0x8] sm:$0xff] %vm52, %v209
    // Predicated region
    $region22: #{feed_forward.1} parent=1 // pred_check
      _
    $region23: #{feed_forward.1} parent=1 // pred_check_branch
      %215 = sbr.rel (0) target = $region25
    $region24: #{feed_forward.1} parent=1 // pred_region
      %s217 = ssub.s32 256, 256
      %218 = vsyncadd [#allocation3], %s217
      %s219 = sshll.u32 [#allocation2], 4
      %s220 = int_to_ptr.vmem [resolvable:$true] %s219
      %225 = dma.vmem_to_hbm [thread:$0]  %s220, 256, %s5, [#allocation3], 128, 128, 8
    $region25: #{feed_forward.1} parent=1 // pred_fallthru
      _
    // Predicated region
    $region26: #{feed_forward.1} parent=1 // pred_check
      _
    $region27: #{feed_forward.1} parent=1 // pred_check_branch
      %227 = sbr.rel (0) target = $region29
    $region28: #{feed_forward.1} parent=1 // pred_region
      %228 = dma.done [#allocation3], 256
    $region29: #{feed_forward.1} parent=1 // pred_fallthru
      _
    %229 = vsyncpa [#allocation3], 1

</llo_original>
